<compile_context>
chip_gen: v7x
topology: tpu7x:2x2x1
jax: 0.10.0
libtpu: 0.0.40
codegen_flags: <defaults>
</compile_context>

<pallas_src>
import jax
import jax.numpy as jnp
from jax.experimental import pallas as pl
from jax.experimental.pallas import tpu as pltpu

_LANE = 128
# ~2 MiB per x block and per out block; double-buffered -> ~8 MiB total, which
# fits the smallest default scoped-VMEM budget (16 MiB on v5e) with headroom
# and stays far under v7x's 64 MiB physical VMEM.
_TARGET_BLOCK_BYTES = 2 * 1024 * 1024


def _mul_kernel(x_ref, f_ref, o_ref):
    # out = x * factor   (factor broadcast over rows)
    o_ref[...] = x_ref[...] * f_ref[...]


def _mul_bias_kernel(x_ref, f_ref, b_ref, o_ref):
    # out = bias + x * factor   (torch.addcmul semantics)
    o_ref[...] = x_ref[...] * f_ref[...] + b_ref[...]


def _sublane_pack(dtype):
    # Rows per packed sublane group: 8 for f32, 16 for bf16, 32 for int8/fp8.
    return 8 * max(1, 4 // jnp.dtype(dtype).itemsize)


def _choose_tiles(m, feat, dtype):
    """VMEM-budget-driven (tm, tn) block shape, dtype/lane aligned."""
    itemsize = jnp.dtype(dtype).itemsize
    sublane = _sublane_pack(dtype)

    # Feature tile: must be a multiple of 128 or equal the full feature dim.
    if feat % _LANE == 0:
        tn = min(feat, 4096)                       # cap so row tile stays large
        tn = max(_LANE, (tn // _LANE) * _LANE)
    else:
        tn = feat                                  # full dim -> always legal

    # Row tile from the byte budget, rounded to the sublane packing.
    budget_rows = max(1, _TARGET_BLOCK_BYTES // max(1, tn * itemsize))
    if m <= sublane:
        tm = m                                     # full dim -> legal even if < 8
    else:
        tm = min(budget_rows, m)
        tm = max(sublane, (tm // sublane) * sublane)
    return tm, tn


def mul_forward(x, factor, bias=None):
    """Element-wise multiply (with optional add) matching Mul.forward.

    x:      [*, feat_size]
    factor: [1] or [feat_size]
    bias:   None, [1] or [feat_size]
    """
    orig_shape = x.shape
    feat = orig_shape[-1]
    m = 1
    for d in orig_shape[:-1]:
        m *= d
    dtype = x.dtype
    x2d = x.reshape(m, feat)

    tm, tn = _choose_tiles(m, feat, dtype)
    grid = (pl.cdiv(m, tm), pl.cdiv(feat, tn))

    x_spec = pl.BlockSpec((tm, tn), lambda i, j: (i, j))
    p_spec = pl.BlockSpec((1, tn), lambda i, j: (0, j))
    o_spec = pl.BlockSpec((tm, tn), lambda i, j: (i, j))

    # Broadcast parameters to a lane-aligned (1, feat) row in x's dtype.
    # TODO(synk): for the scalar ([1]) case a (1,1) SMEM scalar would skip this
    # broadcast; kept as a row since the param block is DMA'd only when its
    # block index changes (second-order cost).
    f_row = jnp.broadcast_to(jnp.asarray(factor, dtype=dtype).reshape(1, -1), (1, feat))

    itemsize = jnp.dtype(dtype).itemsize
    n_terms = 1 if bias is None else 2
    cost = pl.CostEstimate(
        flops=n_terms * m * feat,
        transcendentals=0,
        bytes_accessed=(2 * m * feat + n_terms * feat) * itemsize,
    )
    cparams = pltpu.CompilerParams(dimension_semantics=("parallel", "parallel"))

    if bias is None:
        out2d = pl.pallas_call(
            _mul_kernel,
            out_shape=jax.ShapeDtypeStruct((m, feat), dtype),
            grid=grid,
            in_specs=[x_spec, p_spec],
            out_specs=o_spec,
            compiler_params=cparams,
            cost_estimate=cost,
        )(x2d, f_row)
    else:
        b_row = jnp.broadcast_to(jnp.asarray(bias, dtype=dtype).reshape(1, -1), (1, feat))
        out2d = pl.pallas_call(
            _mul_bias_kernel,
            out_shape=jax.ShapeDtypeStruct((m, feat), dtype),
            grid=grid,
            in_specs=[x_spec, p_spec, p_spec],
            out_specs=o_spec,
            compiler_params=cparams,
            cost_estimate=cost,
        )(x2d, f_row, b_row)

    return out2d.reshape(orig_shape)


if __name__ == "__main__":
    key = jax.random.PRNGKey(0)
    k1, k2, k3 = jax.random.split(key, 3)

    # Module config mirrored here: feat_dependent=True, feat_size=128, bias=True
    batch, seq, feat_size = 2, 8, 128
    init_factor, init_bias = 1.5, 0.25
    factor = jnp.full((feat_size,), init_factor, dtype=jnp.float32)
    bias = jnp.full((feat_size,), init_bias, dtype=jnp.float32)
    x = jax.random.normal(k1, (batch, seq, feat_size), dtype=jnp.float32)

    # bias=True path (torch.addcmul)
    out = jax.block_until_ready(mul_forward(x, factor, bias))
    assert out.shape == x.shape
    assert jnp.allclose(out, x * factor + bias, atol=1e-6)

    # feat_dependent=False path: scalar ([1]) factor, no bias (torch.mul)
    factor_scalar = jnp.array([2.0], dtype=jnp.float32)
    out2 = jax.block_until_ready(mul_forward(x, factor_scalar, None))
    assert jnp.allclose(out2, x * 2.0, atol=1e-6)

    # Non-128-multiple feature dim + non-sublane-divisible rows (masked tail block)
    x3 = jax.random.normal(k2, (3, 41, 192), dtype=jnp.float32)
    f3 = jnp.full((192,), 0.5, dtype=jnp.float32)
    b3 = jnp.full((192,), -1.0, dtype=jnp.float32)
    out3 = jax.block_until_ready(mul_forward(x3, f3, b3))
    assert jnp.allclose(out3, x3 * f3 + b3, atol=1e-6)

    # bf16 activations: sublane-packing-aware row tile (multiple of 16)
    x4 = jax.random.normal(k3, (4, 16, 256), dtype=jnp.bfloat16)
    out4 = jax.block_until_ready(
        mul_forward(x4, jnp.array([1.25], jnp.float32), jnp.array([0.5], jnp.float32)))
    ref4 = x4 * jnp.asarray(1.25, jnp.bfloat16) + jnp.asarray(0.5, jnp.bfloat16)
    assert jnp.allclose(out4.astype(jnp.float32), ref4.astype(jnp.float32), atol=1e-2)

    print("KERNEL_OK")
</pallas_src>

<mosaic_0001>
module attributes {stable_mosaic.version = 11 : i64} {
  func.func @_mul_bias_kernel(%arg0: i32, %arg1: i32, %arg2: memref<16x128xf32, #tpu.memory_space<vmem>>, %arg3: memref<1x128xf32, #tpu.memory_space<vmem>>, %arg4: memref<1x128xf32, #tpu.memory_space<vmem>>, %arg5: memref<16x128xf32, #tpu.memory_space<vmem>>) attributes {dimension_semantics = [#tpu.dimension_semantics<parallel>, #tpu.dimension_semantics<parallel>], iteration_bounds = array<i64: 1, 1>, scalar_prefetch = 0 : i64, scratch_operands = 0 : i64, tpu.core_type = #tpu.core_type<tc>, window_params = [{transform_indices = @transform_0, window_bounds = array<i64: 16, 128>}, {transform_indices = @transform_1, window_bounds = array<i64: 1, 128>}, {transform_indices = @transform_2, window_bounds = array<i64: 1, 128>}, {transform_indices = @transform_3, window_bounds = array<i64: 16, 128>}]} {
    %c0 = arith.constant 0 : index
    %c0_0 = arith.constant 0 : index
    %0 = vector.load %arg2[%c0, %c0_0] : memref<16x128xf32, #tpu.memory_space<vmem>>, vector<16x128xf32>
    %c0_1 = arith.constant 0 : index
    %c0_2 = arith.constant 0 : index
    %1 = vector.load %arg3[%c0_1, %c0_2] : memref<1x128xf32, #tpu.memory_space<vmem>>, vector<1x128xf32>
    %2 = vector.broadcast %1 : vector<1x128xf32> to vector<16x128xf32>
    %3 = arith.mulf %0, %2 : vector<16x128xf32>
    %c0_3 = arith.constant 0 : index
    %c0_4 = arith.constant 0 : index
    %4 = vector.load %arg4[%c0_3, %c0_4] : memref<1x128xf32, #tpu.memory_space<vmem>>, vector<1x128xf32>
    %5 = vector.broadcast %4 : vector<1x128xf32> to vector<16x128xf32>
    %6 = arith.addf %3, %5 : vector<16x128xf32>
    %c0_5 = arith.constant 0 : index
    %c0_6 = arith.constant 0 : index
    %7 = vector.load %arg5[%c0_5, %c0_6] : memref<16x128xf32, #tpu.memory_space<vmem>>, vector<16x128xf32>
    tpu.vector_store %arg5[%c0_5, %c0_6], %6 {strides = array<i32>} : memref<16x128xf32, #tpu.memory_space<vmem>>, vector<16x128xf32>,
    return
  }
  func.func @transform_0(%arg0: i32, %arg1: i32) -> (i32, i32) {
    %c0_i32 = arith.constant 0 : i32
    return %arg0, %arg1 : i32, i32
  }
  func.func @transform_1(%arg0: i32, %arg1: i32) -> (i32, i32) {
    %c0_i32 = arith.constant 0 : i32
    %c0_i32_0 = arith.constant 0 : i32
    return %c0_i32, %arg1 : i32, i32
  }
  func.func @transform_2(%arg0: i32, %arg1: i32) -> (i32, i32) {
    %c0_i32 = arith.constant 0 : i32
    %c0_i32_0 = arith.constant 0 : i32
    return %c0_i32, %arg1 : i32, i32
  }
  func.func @transform_3(%arg0: i32, %arg1: i32) -> (i32, i32) {
    %c0_i32 = arith.constant 0 : i32
    return %arg0, %arg1 : i32, i32
  }
}

</mosaic_0001>

<llo_original>
// kernel: tpu_custom_call.1
$region0: #{tpu_custom_call.1}
  #allocation0 [shape = 'u32[]', space=smem, size = 0x4, offset = 0x4, fixed_abs, tag = 'smem constant byte address 0x4 - core index']
  #allocation1 [shape = 'u32[144,128]{1,0:T(1,128)}', space=vmem, size = 0x12000, scoped, tag = 'internal scratch']
  %s0 = inlined_call_operand.hbm [shape: f32[16,128], index: 0, kind: input, shape index: {}]
  %s1 = inlined_call_operand.vmem [shape: f32[1,128], index: 1, kind: input, shape index: {}]
  %s2 = inlined_call_operand.vmem [shape: f32[1,128], index: 2, kind: input, shape index: {}]
  %s3 = inlined_call_operand.hbm [shape: f32[16,128], index: 3, kind: output, shape index: {}]
  %s4 = sld [smem:[#allocation0]]
  $region26: #{tpu_custom_call.1} parent=0
    _
  %s6 = ssub.s32 1, %s4
  %s7 = scalar_select 0, %s6, %s4
  $region1: #{tpu_custom_call.1} parent=0
    #allocation2 [shape = 'u8[8192]{0}', space=vmem, size = 0x2000, scoped, tag = 'input window, operand 0, single buffered']
    #allocation3 [shape = 's32[1]{0}', space=sflag, size = 0x4, scoped, tag = 'scoped memory for tpu_custom_call.1']
    #allocation4 [shape = 's32[1]{0}', space=sflag, size = 0x4, scoped, tag = 'scoped memory for tpu_custom_call.1']
    #allocation5 [shape = 'u8[8192]{0}', space=vmem, size = 0x2000, scoped, tag = 'output window, operand 0, single buffered']
    %8 = vsyncpa [#allocation3], 0
    %9 = vsyncpa [#allocation4], 0
    // Predicated region
    $region2: #{tpu_custom_call.1} parent=1 // pred_check
      _
    $region3: #{tpu_custom_call.1} parent=1 // pred_check_branch
      %11 = sbr.rel (0) target = $region5
    $region4: #{tpu_custom_call.1} parent=1 // pred_region
      %s13 = ssub.s32 256, 256
      %14 = vsyncadd [#allocation3], %s13
      %s15 = sshll.u32 [#allocation2], 4
      %s16 = int_to_ptr.vmem [resolvable:$true] %s15
      %21 = dma.hbm_to_vmem [thread:$0]  %s0, 256, %s16, [#allocation3], 128, 128, 8
    $region5: #{tpu_custom_call.1} parent=1 // pred_fallthru
      _
    // Predicated region
    $region6: #{tpu_custom_call.1} parent=1 // pred_check
      _
    $region7: #{tpu_custom_call.1} parent=1 // pred_check_branch
      %23 = sbr.rel (0) target = $region9
    $region8: #{tpu_custom_call.1} parent=1 // pred_region
      _
    $region9: #{tpu_custom_call.1} parent=1 // pred_fallthru
      _
    // Predicated region
    $region10: #{tpu_custom_call.1} parent=1 // pred_check
      _
    $region11: #{tpu_custom_call.1} parent=1 // pred_check_branch
      %25 = sbr.rel (0) target = $region13
    $region12: #{tpu_custom_call.1} parent=1 // pred_region
      _
    $region13: #{tpu_custom_call.1} parent=1 // pred_fallthru
      _
    // Predicated region
    $region14: #{tpu_custom_call.1} parent=1 // pred_check
      _
    $region15: #{tpu_custom_call.1} parent=1 // pred_check_branch
      %27 = sbr.rel (0) target = $region17
    $region16: #{tpu_custom_call.1} parent=1 // pred_region
      %28 = dma.done [#allocation3], 256
    $region17: #{tpu_custom_call.1} parent=1 // pred_fallthru
      _
    %v29 = vld [vmem:[#allocation2] sm:$0xff]
    %v30 = vld [vmem:[#allocation2 + $0x8] sm:$0xff]
    %v31 = vld [vmem:[%s1] sm:$0x1]
    %v33 = vlaneseq
    %v34 = vshrl.u32 %v33, 7
    %v35 = vsub.s32 0, %v34
    %v36 = vrot.slane %v31, %v35
    %v38 = vmul.f32 %v29, %v36
    %v39 = vmul.f32 %v30, %v36
    %v40 = vld [vmem:[%s2] sm:$0x1]
    %v42 = vlaneseq
    %v43 = vshrl.u32 %v42, 7
    %v44 = vsub.s32 0, %v43
    %v45 = vrot.slane %v40, %v44
    %v47 = vadd.f32 %v38, %v45
    %v48 = vadd.f32 %v39, %v45
    %49 = vst [vmem:[#allocation5] sm:$0xff] %v47
    %50 = vst [vmem:[#allocation5 + $0x8] sm:$0xff] %v48
    // Predicated region
    $region18: #{tpu_custom_call.1} parent=1 // pred_check
      _
    $region19: #{tpu_custom_call.1} parent=1 // pred_check_branch
      %52 = sbr.rel (0) target = $region21
    $region20: #{tpu_custom_call.1} parent=1 // pred_region
      %s54 = ssub.s32 256, 256
      %55 = vsyncadd [#allocation4], %s54
      %s56 = sshll.u32 [#allocation5], 4
      %s57 = int_to_ptr.vmem [resolvable:$true] %s56
      %62 = dma.vmem_to_hbm [thread:$0]  %s57, 256, %s3, [#allocation4], 128, 128, 8
    $region21: #{tpu_custom_call.1} parent=1 // pred_fallthru
      _
    // Predicated region
    $region22: #{tpu_custom_call.1} parent=1 // pred_check
      _
    $region23: #{tpu_custom_call.1} parent=1 // pred_check_branch
      %64 = sbr.rel (0) target = $region25
    $region24: #{tpu_custom_call.1} parent=1 // pred_region
      %65 = dma.done [#allocation4], 256
    $region25: #{tpu_custom_call.1} parent=1 // pred_fallthru
      _
    %66 = vsyncpa [#allocation3], 1
    %67 = vsyncpa [#allocation4], 1

</llo_original>
